<compile_context>
chip_gen: v7x
topology: tpu7x:2x2x1
jax: 0.10.0
libtpu: 0.0.40
codegen_flags: <defaults>
</compile_context>

<pallas_src>
import jax
import jax.numpy as jnp
from jax.experimental import pallas as pl
from jax.experimental.pallas import tpu as pltpu


def _patch_embed_kernel(p_ref, w_ref, add_ref, out_ref):
    # p_ref:   (TM, K)  bf16  flattened patch pixels (row 0 of each image = 0)
    # w_ref:   (K, E)   bf16  flattened conv weight (resident)
    # add_ref: (TM, E)  bf16  positions (+ conv bias / cls_token), resident
    # out_ref: (TM, E)  f32
    acc = jnp.dot(p_ref[...], w_ref[...], preferred_element_type=jnp.float32)
    out_ref[...] = acc + add_ref[...].astype(jnp.float32)


def _pick_row_tile(batch, rows_per_img, target=512):
    """Largest legal row tile <= target (fallback: smallest legal tile).

    Legal tile: divides the total row count, is either a whole-image multiple
    (additive block tile-invariant -> resident) or an exact divisor of the
    per-image row count, and satisfies the TPU sublane rule (multiple of 8,
    or equal to the full row extent).
    """
    total = batch * rows_per_img
    cands = set()
    for m in range(1, batch + 1):                 # whole images per tile
        if batch % m == 0:
            cands.add(m * rows_per_img)
    for t in range(1, rows_per_img + 1):          # tiles subdividing an image
        if rows_per_img % t == 0:
            cands.add(t)
    legal = [c for c in cands if total % c == 0 and (c % 8 == 0 or c == total)]
    assert legal, "no legal row tile for these shapes"
    capped = [c for c in legal if c <= target]
    return max(capped) if capped else min(legal)


def adaptive_feature_filtering(x, conv_w, conv_b, cls_token, positions, patch_size):
    """x: (B, C, H, W) NCHW float32.  Returns (B, N+1, E) float32."""
    B, C, H, W = x.shape
    P = patch_size
    assert H % P == 0 and W % P == 0, "H, W must be exact multiples of patch_size"
    Hp, Wp = H // P, W // P
    N = Hp * Wp
    S = N + 1                      # rows per image including the cls slot
    E = conv_w.shape[0]
    K = C * P * P
    R = B * S                      # total output rows (batch folded)

    # --- wrapper-side glue ----------------------------------------------------
    # bf16 cast BEFORE the unavoidable NCHW -> patch-major shuffle so the
    # materialized copy moves half the bytes.
    # TODO(synk): accept NHWC input or use CompilerParams(allow_input_fusion)
    # so XLA fuses the transpose/cast into the pallas input DMA instead of a
    # full extra HBM round trip of the input.
    xb = x.astype(jnp.bfloat16)
    patches = xb.reshape(B, C, Hp, P, Wp, P).transpose(0, 2, 4, 1, 3, 5)
    patches = patches.reshape(B, N, K)
    # One zero pixel-row per image: its matmul output is 0, its additive row is
    # (cls_token + positions[0]) -> the kernel writes the cls token in place.
    patches_ext = jnp.concatenate(
        [jnp.zeros((B, 1, K), jnp.bfloat16), patches], axis=1).reshape(R, K)

    w_mat = conv_w.reshape(E, K).T.astype(jnp.bfloat16)                      # (K, E)
    add_ext = jnp.concatenate(
        [cls_token.reshape(1, E) + positions[:1, :],                         # cls row
         positions[1:, :] + conv_b[None, :]],                                # token rows
        axis=0).astype(jnp.bfloat16)                                         # (S, E)

    # --- row tiling ------------------------------------------------------------
    TM = _pick_row_tile(B, S)
    if TM % S == 0:
        # Whole images per tile: the additive block is identical for every grid
        # step -> index (0,0), resident, fetched from HBM exactly once.
        add_k = jnp.tile(add_ext, (TM // S, 1))                              # (TM, E)
        add_spec = pl.BlockSpec((TM, E), lambda i: (0, 0))
    else:
        # Large-N regime: tiles subdivide an image; the add block cycles.
        assert S % TM == 0
        bpi = S // TM
        add_k = add_ext
        add_spec = pl.BlockSpec((TM, E), lambda i: (i % bpi, 0))

    # --- VMEM budget guard (v7x has 64 MiB physical / 32 MiB default scoped) ---
    est_vmem = (2 * TM * K * 2          # double-buffered patch tiles (bf16)
                + K * E * 2             # resident weight (bf16)
                + add_k.shape[0] * E * 2
                + 2 * TM * E * 4)       # double-buffered f32 output tiles
    # TODO(synk): tile K (extra grid axis + f32 VMEM accumulator, init/finalize
    # via pl.when) when K*E or TM*K no longer fit v7x VMEM.
    assert est_vmem < 48 * 1024 * 1024, f"tiles too large for VMEM: {est_vmem} bytes"

    out_flat = pl.pallas_call(
        _patch_embed_kernel,
        out_shape=jax.ShapeDtypeStruct((R, E), jnp.float32),
        grid=(R // TM,),
        in_specs=[
            pl.BlockSpec((TM, K), lambda i: (i, 0)),    # patch rows (streamed)
            pl.BlockSpec((K, E), lambda i: (0, 0)),     # weight   (resident)
            add_spec,                                    # pos+bias (resident)
        ],
        out_specs=pl.BlockSpec((TM, E), lambda i: (i, 0)),
        compiler_params=pltpu.CompilerParams(
            dimension_semantics=("parallel",),
            vmem_limit_bytes=max(est_vmem + (1 << 20), 32 * 1024 * 1024),
        ),
    )(patches_ext, w_mat, add_k)

    return out_flat.reshape(B, S, E)


if __name__ == "__main__":
    # Small shapes consistent with the module: batch=2, channels=4, spatial=16,
    # patch_size=8 -> N=4 patch tokens, emb_size=128.
    B, C, H, W = 2, 4, 16, 16
    P = 8
    E = 128
    N = (H // P) * (W // P)

    key = jax.random.PRNGKey(0)
    k_x, k_w, k_b, k_cls, k_pos = jax.random.split(key, 5)

    x = jax.random.normal(k_x, (B, C, H, W), dtype=jnp.float32)
    conv_w = jax.random.normal(k_w, (E, C, P, P), dtype=jnp.float32) * 0.02
    conv_b = jax.random.normal(k_b, (E,), dtype=jnp.float32) * 0.02
    cls_token = jax.random.normal(k_cls, (1, 1, E), dtype=jnp.float32)
    positions = jax.random.normal(k_pos, (N + 1, E), dtype=jnp.float32)

    out = adaptive_feature_filtering(x, conv_w, conv_b, cls_token, positions, P)
    out = jax.block_until_ready(out)

    # Pure-JAX reference with matched bf16 operand rounding (f32 accumulation).
    xb = x.astype(jnp.bfloat16).astype(jnp.float32)
    pr = xb.reshape(B, C, H // P, P, W // P, P).transpose(0, 2, 4, 1, 3, 5)
    pr = pr.reshape(B, N, C * P * P)
    wr = conv_w.reshape(E, -1).astype(jnp.bfloat16).astype(jnp.float32)
    add_tok = (positions[1:] + conv_b[None, :]).astype(jnp.bfloat16).astype(jnp.float32)
    cls_row = (cls_token.reshape(1, E) + positions[:1, :]).astype(jnp.bfloat16)
    cls_row = cls_row.astype(jnp.float32)
    ref_tok = jnp.einsum("bnk,ek->bne", pr, wr) + add_tok[None]
    ref = jnp.concatenate(
        [jnp.broadcast_to(cls_row[None, :, :], (B, 1, E)), ref_tok], axis=1)

    assert out.shape == (B, N + 1, E)
    err = float(jnp.abs(out - ref).max())
    assert jnp.allclose(out, ref, atol=1e-2, rtol=1e-2), f"max abs err {err}"
    print("KERNEL_OK")
</pallas_src>

<mosaic_0001>
module attributes {stable_mosaic.version = 11 : i64} {
  func.func @_patch_embed_kernel(%arg0: i32, %arg1: memref<10x256xbf16, #tpu.memory_space<vmem>>, %arg2: memref<256x128xbf16, #tpu.memory_space<vmem>>, %arg3: memref<10x128xbf16, #tpu.memory_space<vmem>>, %arg4: memref<10x128xf32, #tpu.memory_space<vmem>>) attributes {dimension_semantics = [#tpu.dimension_semantics<parallel>], iteration_bounds = array<i64: 1>, scalar_prefetch = 0 : i64, scratch_operands = 0 : i64, tpu.core_type = #tpu.core_type<tc>, window_params = [{transform_indices = @transform_0, window_bounds = array<i64: 10, 256>}, {pipeline_mode = #tpu.pipeline_mode<synchronous>, transform_indices = @transform_1, window_bounds = array<i64: 256, 128>}, {pipeline_mode = #tpu.pipeline_mode<synchronous>, transform_indices = @transform_2, window_bounds = array<i64: 10, 128>}, {transform_indices = @transform_3, window_bounds = array<i64: 10, 128>}]} {
    %c0 = arith.constant 0 : index
    %c0_0 = arith.constant 0 : index
    %0 = vector.load %arg1[%c0, %c0_0] : memref<10x256xbf16, #tpu.memory_space<vmem>>, vector<10x256xbf16>
    %c0_1 = arith.constant 0 : index
    %c0_2 = arith.constant 0 : index
    %1 = vector.load %arg2[%c0_1, %c0_2] : memref<256x128xbf16, #tpu.memory_space<vmem>>, vector<256x128xbf16>
    %cst = arith.constant dense<0.000000e+00> : vector<10x128xf32>
    %2 = tpu.matmul %0, %1, %cst {dimension_numbers = #tpu.dot_dimension_numbers<[1], [0], [0], [1], [0, 0, 1, 1], [], []>} : vector<10x256xbf16>, vector<256x128xbf16>, vector<10x128xf32> -> vector<10x128xf32>
    %c0_3 = arith.constant 0 : index
    %c0_4 = arith.constant 0 : index
    %3 = vector.load %arg3[%c0_3, %c0_4] : memref<10x128xbf16, #tpu.memory_space<vmem>>, vector<10x128xbf16>
    %4 = arith.extf %3 : vector<10x128xbf16> to vector<10x128xf32>
    %5 = arith.addf %2, %4 : vector<10x128xf32>
    %c0_5 = arith.constant 0 : index
    %c0_6 = arith.constant 0 : index
    %6 = vector.load %arg4[%c0_5, %c0_6] : memref<10x128xf32, #tpu.memory_space<vmem>>, vector<10x128xf32>
    tpu.vector_store %arg4[%c0_5, %c0_6], %5 {strides = array<i32>} : memref<10x128xf32, #tpu.memory_space<vmem>>, vector<10x128xf32>,
    return
  }
  func.func @transform_0(%arg0: i32) -> (i32, i32) {
    %c0_i32 = arith.constant 0 : i32
    %c0_i32_0 = arith.constant 0 : i32
    return %arg0, %c0_i32 : i32, i32
  }
  func.func @transform_1(%arg0: i32) -> (i32, i32) {
    %c0_i32 = arith.constant 0 : i32
    %c0_i32_0 = arith.constant 0 : i32
    %c0_i32_1 = arith.constant 0 : i32
    return %c0_i32, %c0_i32_0 : i32, i32
  }
  func.func @transform_2(%arg0: i32) -> (i32, i32) {
    %c0_i32 = arith.constant 0 : i32
    %c0_i32_0 = arith.constant 0 : i32
    %c0_i32_1 = arith.constant 0 : i32
    return %c0_i32, %c0_i32_0 : i32, i32
  }
  func.func @transform_3(%arg0: i32) -> (i32, i32) {
    %c0_i32 = arith.constant 0 : i32
    %c0_i32_0 = arith.constant 0 : i32
    return %arg0, %c0_i32 : i32, i32
  }
}

</mosaic_0001>

<llo_original>
// kernel: tpu_custom_call.1
$region0: #{tpu_custom_call.1}
  #allocation0 [shape = 'u32[]', space=smem, size = 0x4, offset = 0x4, fixed_abs, tag = 'smem constant byte address 0x4 - core index']
  #allocation1 [shape = 'u32[144,128]{1,0:T(1,128)}', space=vmem, size = 0x12000, scoped, tag = 'internal scratch']
  %s0 = inlined_call_operand.hbm [shape: bf16[10,256], index: 0, kind: input, shape index: {}]
  %s1 = inlined_call_operand.hbm [shape: bf16[256,128], index: 1, kind: input, shape index: {}]
  %s2 = inlined_call_operand.hbm [shape: bf16[10,128], index: 2, kind: input, shape index: {}]
  %s3 = inlined_call_operand.hbm [shape: f32[10,128], index: 3, kind: output, shape index: {}]
  %s4 = sld [smem:[#allocation0]]
  $region34: #{tpu_custom_call.1} parent=0
    _
  %s6 = ssub.s32 1, %s4
  %s7 = scalar_select 0, %s6, %s4
  $region1: #{tpu_custom_call.1} parent=0
    #allocation2 [shape = 'u8[8192]{0}', space=vmem, size = 0x2000, scoped, tag = 'input window, operand 0, single buffered']
    #allocation3 [shape = 's32[1]{0}', space=sflag, size = 0x4, scoped, tag = 'scoped memory for tpu_custom_call.1']
    #allocation4 [shape = 's32[1]{0}', space=sflag, size = 0x4, scoped, tag = 'scoped memory for tpu_custom_call.1']
    #allocation5 [shape = 'u8[65536]{0}', space=vmem, size = 0x10000, scoped, tag = 'input window, operand 1, single buffered']
    #allocation6 [shape = 's32[1]{0}', space=sflag, size = 0x4, scoped, tag = 'scoped memory for tpu_custom_call.1']
    #allocation7 [shape = 'u8[4096]{0}', space=vmem, size = 0x1000, scoped, tag = 'input window, operand 2, single buffered']
    #allocation8 [shape = 'u8[8192]{0}', space=vmem, size = 0x2000, scoped, tag = 'output window, operand 0, single buffered']
    %8 = vsyncpa [#allocation3], 0
    %9 = vsyncpa [#allocation6], 0
    %10 = vsyncpa [#allocation4], 0
    // Predicated region
    $region2: #{tpu_custom_call.1} parent=1 // pred_check
      _
    $region3: #{tpu_custom_call.1} parent=1 // pred_check_branch
      %12 = sbr.rel (0) target = $region5
    $region4: #{tpu_custom_call.1} parent=1 // pred_region
      %s14 = ssub.s32 256, 256
      %15 = vsyncadd [#allocation3], %s14
      %s16 = sshll.u32 [#allocation2], 4
      %s17 = int_to_ptr.vmem [resolvable:$true] %s16
      %22 = dma.hbm_to_vmem [thread:$0]  %s0, 256, %s17, [#allocation3], 128, 128, 8
    $region5: #{tpu_custom_call.1} parent=1 // pred_fallthru
      _
    // Predicated region
    $region6: #{tpu_custom_call.1} parent=1 // pred_check
      _
    $region7: #{tpu_custom_call.1} parent=1 // pred_check_branch
      %24 = sbr.rel (0) target = $region9
    $region8: #{tpu_custom_call.1} parent=1 // pred_region
      %s26 = ssub.s32 2048, 2048
      %27 = vsyncadd [#allocation6], %s26
      %s28 = sshll.u32 [#allocation5], 4
      %s29 = int_to_ptr.vmem [resolvable:$true] %s28
      %34 = dma.hbm_to_vmem [thread:$0]  %s1, 2048, %s29, [#allocation6], 64, 64, 4
    $region9: #{tpu_custom_call.1} parent=1 // pred_fallthru
      _
    // Predicated region
    $region10: #{tpu_custom_call.1} parent=1 // pred_check
      _
    $region11: #{tpu_custom_call.1} parent=1 // pred_check_branch
      %36 = sbr.rel (0) target = $region13
    $region12: #{tpu_custom_call.1} parent=1 // pred_region
      %s38 = ssub.s32 128, 128
      %39 = vsyncadd [#allocation6], %s38
      %s40 = sshll.u32 [#allocation7], 4
      %s41 = int_to_ptr.vmem [resolvable:$true] %s40
      %46 = dma.hbm_to_vmem [thread:$0]  %s2, 128, %s41, [#allocation6], 64, 64, 4
    $region13: #{tpu_custom_call.1} parent=1 // pred_fallthru
      _
    // Predicated region
    $region14: #{tpu_custom_call.1} parent=1 // pred_check
      _
    $region15: #{tpu_custom_call.1} parent=1 // pred_check_branch
      %48 = sbr.rel (0) target = $region17
    $region16: #{tpu_custom_call.1} parent=1 // pred_region
      %49 = dma.done [#allocation3], 256
    $region17: #{tpu_custom_call.1} parent=1 // pred_fallthru
      _
    // Predicated region
    $region18: #{tpu_custom_call.1} parent=1 // pred_check
      _
    $region19: #{tpu_custom_call.1} parent=1 // pred_check_branch
      %51 = sbr.rel (0) target = $region21
    $region20: #{tpu_custom_call.1} parent=1 // pred_region
      %52 = dma.done [#allocation6], 2048
    $region21: #{tpu_custom_call.1} parent=1 // pred_fallthru
      _
    // Predicated region
    $region22: #{tpu_custom_call.1} parent=1 // pred_check
      _
    $region23: #{tpu_custom_call.1} parent=1 // pred_check_branch
      %54 = sbr.rel (0) target = $region25
    $region24: #{tpu_custom_call.1} parent=1 // pred_region
      %55 = dma.done [#allocation6], 128
    $region25: #{tpu_custom_call.1} parent=1 // pred_fallthru
      _
    %v57 = vld [vmem:[#allocation2] sm:$0xff]
    %v58 = vld [vmem:[#allocation2 + $0x8] sm:$0x11]
    %v59 = vld [vmem:[#allocation5] sm:$0xf]
    %v60 = vld [vmem:[#allocation5 + $0x4] sm:$0xf]
    %v61 = vld [vmem:[#allocation5 + $0x8] sm:$0xf]
    %v62 = vld [vmem:[#allocation5 + $0xc] sm:$0xf]
    %v63 = vld [vmem:[#allocation5 + $0x10] sm:$0xf]
    %v64 = vld [vmem:[#allocation5 + $0x14] sm:$0xf]
    %v65 = vld [vmem:[#allocation5 + $0x18] sm:$0xf]
    %v66 = vld [vmem:[#allocation5 + $0x1c] sm:$0xf]
    %v67 = vld [vmem:[#allocation5 + $0x20] sm:$0xf]
    %v68 = vld [vmem:[#allocation5 + $0x24] sm:$0xf]
    %v69 = vld [vmem:[#allocation5 + $0x28] sm:$0xf]
    %v70 = vld [vmem:[#allocation5 + $0x2c] sm:$0xf]
    %v71 = vld [vmem:[#allocation5 + $0x30] sm:$0xf]
    %v72 = vld [vmem:[#allocation5 + $0x34] sm:$0xf]
    %v73 = vld [vmem:[#allocation5 + $0x38] sm:$0xf]
    %v74 = vld [vmem:[#allocation5 + $0x3c] sm:$0xf]
    %v75 = vld [vmem:[#allocation5 + $0x40] sm:$0xf]
    %v76 = vld [vmem:[#allocation5 + $0x44] sm:$0xf]
    %v77 = vld [vmem:[#allocation5 + $0x48] sm:$0xf]
    %v78 = vld [vmem:[#allocation5 + $0x4c] sm:$0xf]
    %v79 = vld [vmem:[#allocation5 + $0x50] sm:$0xf]
    %v80 = vld [vmem:[#allocation5 + $0x54] sm:$0xf]
    %v81 = vld [vmem:[#allocation5 + $0x58] sm:$0xf]
    %v82 = vld [vmem:[#allocation5 + $0x5c] sm:$0xf]
    %v83 = vld [vmem:[#allocation5 + $0x60] sm:$0xf]
    %v84 = vld [vmem:[#allocation5 + $0x64] sm:$0xf]
    %v85 = vld [vmem:[#allocation5 + $0x68] sm:$0xf]
    %v86 = vld [vmem:[#allocation5 + $0x6c] sm:$0xf]
    %v87 = vld [vmem:[#allocation5 + $0x70] sm:$0xf]
    %v88 = vld [vmem:[#allocation5 + $0x74] sm:$0xf]
    %v89 = vld [vmem:[#allocation5 + $0x78] sm:$0xf]
    %v90 = vld [vmem:[#allocation5 + $0x7c] sm:$0xf]
    %v91 = vld [vmem:[#allocation7] sm:$0xf]
    %v92 = vld [vmem:[#allocation7 + $0x4] sm:$0x1]
    %v93 = vunpack.c.l.bf16 %v91
    %v94 = vunpack.c.l.bf16 %v92
    %v97 = vunpack.c.l.b16 %v57
    %v98 = vunpack.c.h.b16 %v57
    %v99 = vunpack.c.l.b16 %v58
    %v100 = vunpack.c.h.b16 %v58
    %v101 = vpack.c.b16 %v99, %v97
    %v102 = vpack.c.b16 %v100, %v98
    %v137 = vunpack.c.l.b16 %v59
    %v138 = vunpack.c.l.b16 %v60
    %v139 = vunpack.c.l.b16 %v61
    %v140 = vunpack.c.l.b16 %v62
    %v141 = vunpack.c.l.b16 %v63
    %v142 = vunpack.c.l.b16 %v64
    %v143 = vunpack.c.l.b16 %v65
    %v144 = vunpack.c.l.b16 %v66
    %v145 = vunpack.c.l.b16 %v67
    %v146 = vunpack.c.l.b16 %v68
    %v147 = vunpack.c.l.b16 %v69
    %v148 = vunpack.c.l.b16 %v70
    %v149 = vunpack.c.l.b16 %v71
    %v150 = vunpack.c.l.b16 %v72
    %v151 = vunpack.c.l.b16 %v73
    %v152 = vunpack.c.l.b16 %v74
    %v153 = vunpack.c.l.b16 %v75
    %v154 = vunpack.c.l.b16 %v76
    %v155 = vunpack.c.l.b16 %v77
    %v156 = vunpack.c.l.b16 %v78
    %v157 = vunpack.c.l.b16 %v79
    %v158 = vunpack.c.l.b16 %v80
    %v159 = vunpack.c.l.b16 %v81
    %v160 = vunpack.c.l.b16 %v82
    %v161 = vunpack.c.l.b16 %v83
    %v162 = vunpack.c.l.b16 %v84
    %v163 = vunpack.c.l.b16 %v85
    %v164 = vunpack.c.l.b16 %v86
    %v165 = vunpack.c.l.b16 %v87
    %v166 = vunpack.c.l.b16 %v88
    %v167 = vunpack.c.l.b16 %v89
    %v168 = vunpack.c.l.b16 %v90
    %v169 = vpack.c.b16 %v138, %v137
    %v170 = vpack.c.b16 %v140, %v139
    %v171 = vpack.c.b16 %v142, %v141
    %v172 = vpack.c.b16 %v144, %v143
    %v173 = vpack.c.b16 %v146, %v145
    %v174 = vpack.c.b16 %v148, %v147
    %v175 = vpack.c.b16 %v150, %v149
    %v176 = vpack.c.b16 %v152, %v151
    %v177 = vpack.c.b16 %v154, %v153
    %v178 = vpack.c.b16 %v156, %v155
    %v179 = vpack.c.b16 %v158, %v157
    %v180 = vpack.c.b16 %v160, %v159
    %v181 = vpack.c.b16 %v162, %v161
    %v182 = vpack.c.b16 %v164, %v163
    %v183 = vpack.c.b16 %v166, %v165
    %v184 = vpack.c.b16 %v168, %v167
    %201 = vmatprep.subr.bf16.mxu0 0
    %202 = vmatpush1.bf16.msra.mxu0 %v169
    %203 = vmatprep.subr.bf16.mxu0 0
    %204 = vmatpush1.bf16.msra.mxu0 %v170
    %205 = vmatprep.subr.bf16.mxu0 0
    %206 = vmatpush1.bf16.msra.mxu0 %v171
    %207 = vmatprep.subr.bf16.mxu0 0
    %208 = vmatpush1.bf16.msra.mxu0 %v172
    %209 = vmatprep.subr.bf16.mxu0 0
    %210 = vmatpush1.bf16.msra.mxu0 %v173
    %211 = vmatprep.subr.bf16.mxu0 0
    %212 = vmatpush1.bf16.msra.mxu0 %v174
    %213 = vmatprep.subr.bf16.mxu0 0
    %214 = vmatpush1.bf16.msra.mxu0 %v175
    %215 = vmatprep.subr.bf16.mxu0 0
    %216 = vmatpush1.bf16.msra.mxu0 %v176
    %217 = vmatprep.subr.bf16.mxu0 0
    %218 = vmatpush1.bf16.msra.mxu0 %v177
    %219 = vmatprep.subr.bf16.mxu0 0
    %220 = vmatpush1.bf16.msra.mxu0 %v178
    %221 = vmatprep.subr.bf16.mxu0 0
    %222 = vmatpush1.bf16.msra.mxu0 %v179
    %223 = vmatprep.subr.bf16.mxu0 0
    %224 = vmatpush1.bf16.msra.mxu0 %v180
    %225 = vmatprep.subr.bf16.mxu0 0
    %226 = vmatpush1.bf16.msra.mxu0 %v181
    %227 = vmatprep.subr.bf16.mxu0 0
    %228 = vmatpush1.bf16.msra.mxu0 %v182
    %229 = vmatprep.subr.bf16.mxu0 0
    %230 = vmatpush1.bf16.msra.mxu0 %v183
    %231 = vmatprep.subr.bf16.mxu0 0
    %232 = vmatpush1.bf16.msra.mxu0 %v184
    %233 = vmatprep.mubr.bf16.mxu0 %v102
    %234 = vmatmul.mubr.bf16.gmra.mrb[0].mxu0 %v101
    %v235 = vpop.f32.mrb[0].mxu0
    %v236 = vadd.f32 %v93, %v235
    %v237 = vpop.f32.mrb[0].mxu0
    %v238 = vpop.f32.mrb[0].mxu0
    %v239 = vadd.f32 %v94, %v238
    %v240 = vpop.f32.mrb[0].mxu0
    %241 = vdwg.mxu0
    %242 = vst [vmem:[#allocation8] sm:$0xff] %v236
    %243 = vst [vmem:[#allocation8 + $0x8] sm:$0x3] %v239
    // Predicated region
    $region26: #{tpu_custom_call.1} parent=1 // pred_check
      _
    $region27: #{tpu_custom_call.1} parent=1 // pred_check_branch
      %245 = sbr.rel (0) target = $region29
    $region28: #{tpu_custom_call.1} parent=1 // pred_region
      %s247 = ssub.s32 256, 256
      %248 = vsyncadd [#allocation4], %s247
      %s249 = sshll.u32 [#allocation8], 4
      %s250 = int_to_ptr.vmem [resolvable:$true] %s249
      %255 = dma.vmem_to_hbm [thread:$0]  %s250, 256, %s3, [#allocation4], 128, 128, 8
    $region29: #{tpu_custom_call.1} parent=1 // pred_fallthru
      _
    // Predicated region
    $region30: #{tpu_custom_call.1} parent=1 // pred_check
      _
    $region31: #{tpu_custom_call.1} parent=1 // pred_check_branch
      %257 = sbr.rel (0) target = $region33
    $region32: #{tpu_custom_call.1} parent=1 // pred_region
      %258 = dma.done [#allocation4], 256
    $region33: #{tpu_custom_call.1} parent=1 // pred_fallthru
      _
    %259 = vsyncpa [#allocation3], 1
    %260 = vsyncpa [#allocation6], 1
    %261 = vsyncpa [#allocation4], 1

</llo_original>
